<compile_context>
chip_gen: v7x
topology: tpu7x:2x2x1
jax: 0.10.0
libtpu: 0.0.40
codegen_flags: <defaults>
</compile_context>

<pallas_src>
import numpy as np
import jax
import jax.numpy as jnp
from jax import lax
from jax.experimental import pallas as pl
from jax.experimental.pallas import tpu as pltpu


def _make_kernel(N, C, H, W, KH, KW, E, eps, embed_normalize, bridge_relu):
    """Fused conv -> (batchnorm) -> relu -> linear(-> relu); HW in lanes."""
    HW = H * W
    ph, pw = (KH - 1) // 2, (KW - 1) // 2
    inv_cnt = 1.0 / float(N * HW)

    def lane_roll(x, s):
        # rolled[..., k] = x[..., (k + s) % HW] with a STATIC shift s.
        # Implemented as a concat of two lane slices (unambiguous semantics,
        # lowers to an XLU lane rotate).
        s = s % HW
        if s == 0:
            return x
        return jnp.concatenate([x[:, s:], x[:, :s]], axis=-1)

    def kernel(xflat_ref, masks_ref, cw_ref, cb_ref, gamma_ref, beta_ref,
               bwT_ref, bb_ref, out_ref):
        taps = [(dh, dw) for dh in range(KH) for dw in range(KW)]

        # --- Conv2d(C, C, (KH, KW), stride=1, 'same') via masked lane rolls.
        # Each input-channel tap is rolled/masked ONCE and accumulated into all
        # output channels (C*KH*KW rolls, not C*C*KH*KW).
        accs = [jnp.zeros((N, HW), jnp.float32) for _ in range(C)]
        for ci in range(C):
            x_ci = xflat_ref[ci]                       # (N, HW), lane-dense
            for t, (dh, dw) in enumerate(taps):
                if dh == ph and dw == pw:
                    tap = x_ci                         # centre tap: no roll/mask
                else:
                    s = (dh - ph) * W + (dw - pw)
                    tap = lane_roll(x_ci, s) * masks_ref[t:t + 1, :]
                for co in range(C):
                    wscal = cw_ref[((co * C + ci) * KH + dh) * KW + dw]
                    accs[co] = accs[co] + wscal * tap

        # --- Per-channel BN (training batch stats) / bias + ReLU, with the
        # bridge Linear fused per channel (no feature staging scratch).
        out = jnp.zeros((N, E), jnp.float32)
        for co in range(C):
            acc = accs[co]
            if embed_normalize:
                # Conv bias is exactly cancelled by the batch-mean subtraction,
                # so it is skipped (identical math, one less (N,HW) VPU pass).
                s1 = jnp.sum(acc)
                s2 = jnp.sum(acc * acc)
                mu = s1 * inv_cnt
                var = jnp.maximum(s2 * inv_cnt - mu * mu, 0.0)   # biased var
                scale = gamma_ref[co] * lax.rsqrt(var + eps)     # EUP rsqrt
                acc = (acc - mu) * scale + beta_ref[co]
            else:
                acc = acc + cb_ref[co]
            acc = jnp.maximum(acc, 0.0)
            # Fused bridge block: (N, HW) x (HW, E) -- bf16 MXU operands,
            # f32 accumulation.  bwT is passed pre-transposed in bf16.
            out = out + jnp.dot(acc.astype(jnp.bfloat16),
                                bwT_ref[co * HW:(co + 1) * HW, :],
                                preferred_element_type=jnp.float32)

        out = out + bb_ref[...]                        # (1, E) broadcast
        if bridge_relu:
            out = jnp.maximum(out, 0.0)
        out_ref[...] = out                             # (N, E): wrapper reshapes only

    return kernel


class VisualFeatureExtractorPallas:
    """JAX/Pallas port of VisualFeatureExtractor (synthetic deterministic init)."""

    def __init__(self, load_scale, slice_width, slice_height, embed_dim, stride,
                 embed_normalize=True, bridge_relu=True, kernel_size=(3, 3),
                 num_convolutions=1, *, key):
        if load_scale == 'gray-scale':
            self.dim3 = 1
        elif load_scale == 'RGB-scale':
            self.dim3 = 3
        else:
            raise ValueError(load_scale)
        self.slice_width = slice_width
        self.slice_height = slice_height
        self.embed_dim = embed_dim
        self.stride = stride
        self.embed_normalize = embed_normalize
        self.bridge_relu = bridge_relu
        self.kernel_size = (slice_height, kernel_size[1]) if kernel_size[0] == -1 else kernel_size
        assert self.kernel_size[0] % 2 == 1 and self.kernel_size[1] % 2 == 1
        if num_convolutions != 1:
            # TODO(synk): multi-conv stacking needs in-kernel re-masking between layers.
            raise NotImplementedError("only num_convolutions=1 is implemented")
        self.num_convolutions = num_convolutions

        KH, KW = self.kernel_size
        in_features = slice_width * stride * slice_height * self.dim3
        ks = jax.random.split(key, 6)
        u = lambda k, shp: jax.random.uniform(k, shp, jnp.float32, -0.08, 0.08)
        # Deterministic uniform(-0.08, 0.08) init, mirroring the PyTorch __init__.
        self.conv_w = u(ks[0], (self.dim3, self.dim3, KH, KW))   # OIHW
        self.conv_b = u(ks[1], (self.dim3,))
        self.bn_gamma = u(ks[2], (self.dim3,))
        self.bn_beta = u(ks[3], (self.dim3,))
        self.bridge_w = u(ks[4], (embed_dim, in_features))       # PyTorch Linear layout
        self.bridge_b = u(ks[5], (embed_dim,))
        # Pre-transposed bf16 bridge weight: in-kernel (N,HW)@(HW,E) per channel
        # (2x MXU rate, f32 accumulation) and no output transpose in the wrapper.
        self.bridge_wT_bf16 = jnp.asarray(self.bridge_w.T, jnp.bfloat16)

        # Precomputed per-tap validity masks for the flattened-lane conv:
        # lane k = h*W + w, tap (dh, dw) valid iff the (h+dh-ph, w+dw-pw) source
        # lies inside the window (zero-padding semantics of 'same' conv).
        H, W = slice_height, slice_width * stride
        ph, pw = (KH - 1) // 2, (KW - 1) // 2
        hh, ww = np.meshgrid(np.arange(H), np.arange(W), indexing='ij')
        masks = []
        for dh in range(KH):
            for dw in range(KW):
                hs, ws = hh + dh - ph, ww + dw - pw
                valid = (hs >= 0) & (hs < H) & (ws >= 0) & (ws < W)
                masks.append(valid.reshape(-1))
        self.tap_masks = jnp.asarray(np.stack(masks).astype(np.float32))  # (KH*KW, H*W)

    # ---- glue: overlapping window extraction (matches the python slicing loop) ----
    def _slice_windows(self, images):
        B, C, H, Wimg = images.shape
        sw, st = self.slice_width, self.stride
        src_len = int((Wimg - (st // 2) * sw * 2) / sw)
        win = sw * st
        slices = jnp.stack(
            [images[:, :, :, i * sw: i * sw + win] for i in range(src_len)], axis=1)
        return slices.reshape(B * src_len, C, H, win), B, src_len, win

    def __call__(self, images):
        assert images.shape[1] == self.dim3 and images.shape[2] == self.slice_height
        # TODO(synk): fold the overlapping-window extraction into the kernel
        # (manual DMA gather over (B, src_len)) to remove the duplicated-window
        # HBM copy; kept as XLA glue here.
        pixels, B, src_len, win = self._slice_windows(images.astype(jnp.float32))
        N, C, H, W = pixels.shape
        KH, KW = self.kernel_size
        E = self.embed_dim
        HW = H * W
        # Lane-dense compute layout: windows in sublanes, flattened (h, w) in lanes.
        xflat = jnp.transpose(pixels, (1, 0, 2, 3)).reshape(C, N, HW)

        kernel = _make_kernel(N, C, H, W, KH, KW, E, 1e-5,
                              self.embed_normalize, self.bridge_relu)

        in_out_bytes = (xflat.size * 4 + self.tap_masks.size * 4
                        + self.bridge_wT_bf16.size * 2 + (E + 1) * 4 + N * E * 4)
        # TODO(synk): at large N, add a grid over N ("parallel") with a two-pass
        # BN (per-block partial sums + tiny finalize) so both v7x TensorCores are
        # used and per-block VMEM stays inside the 32 MiB scoped default.
        out_ne = pl.pallas_call(
            kernel,
            out_shape=jax.ShapeDtypeStruct((N, E), jnp.float32),
            in_specs=[
                pl.BlockSpec(memory_space=pltpu.MemorySpace.VMEM),   # xflat (C, N, HW)
                pl.BlockSpec(memory_space=pltpu.MemorySpace.VMEM),   # tap masks (KH*KW, HW)
                pl.BlockSpec(memory_space=pltpu.MemorySpace.SMEM),   # conv weight (flat)
                pl.BlockSpec(memory_space=pltpu.MemorySpace.SMEM),   # conv bias
                pl.BlockSpec(memory_space=pltpu.MemorySpace.SMEM),   # BN gamma
                pl.BlockSpec(memory_space=pltpu.MemorySpace.SMEM),   # BN beta
                pl.BlockSpec(memory_space=pltpu.MemorySpace.VMEM),   # bridge W^T (C*HW, E) bf16
                pl.BlockSpec(memory_space=pltpu.MemorySpace.VMEM),   # bridge b (1, E)
            ],
            out_specs=pl.BlockSpec(memory_space=pltpu.MemorySpace.VMEM),
            compiler_params=pltpu.CompilerParams(
                vmem_limit_bytes=int(max(4 << 20, min(96 << 20, 4 * in_out_bytes)))),
        )(
            xflat,
            self.tap_masks,
            self.conv_w.reshape(-1),
            self.conv_b,
            self.bn_gamma,
            self.bn_beta,
            self.bridge_wT_bf16,
            self.bridge_b.reshape(1, E),
        )
        return out_ne.reshape(B, src_len, E)


def reference_forward(model, images):
    """Pure-JAX reference mirroring the PyTorch forward (training-mode BN)."""
    pixels, B, src_len, win = model._slice_windows(images.astype(jnp.float32))
    N, C, H, W = pixels.shape
    KH, KW = model.kernel_size
    ph, pw = (KH - 1) // 2, (KW - 1) // 2
    y = lax.conv_general_dilated(pixels, model.conv_w, (1, 1),
                                 padding=((ph, ph), (pw, pw)),
                                 dimension_numbers=('NCHW', 'OIHW', 'NCHW'))
    y = y + model.conv_b.reshape(1, C, 1, 1)
    if model.embed_normalize:
        mu = y.mean(axis=(0, 2, 3), keepdims=True)
        var = ((y - mu) ** 2).mean(axis=(0, 2, 3), keepdims=True)
        y = (y - mu) / jnp.sqrt(var + 1e-5) * model.bn_gamma.reshape(1, C, 1, 1) \
            + model.bn_beta.reshape(1, C, 1, 1)
    y = jnp.maximum(y, 0.0)
    flat = y.reshape(N, C * H * W)
    out = flat @ model.bridge_w.T + model.bridge_b
    if model.bridge_relu:
        out = jnp.maximum(out, 0.0)
    return out.reshape(B, src_len, model.embed_dim)


if __name__ == "__main__":
    key = jax.random.PRNGKey(0)
    pkey, xkey = jax.random.split(key)

    # gray-scale, slice_width=4, slice_height=16, stride=2, embed_dim=32
    model = VisualFeatureExtractorPallas('gray-scale', slice_width=4, slice_height=16,
                                         embed_dim=32, stride=2, key=pkey)
    # images: (batch=2, channels=1, height=16, width=40) -> src_len = (40 - 8)/4 = 8
    images = jax.random.uniform(xkey, (2, 1, 16, 40), jnp.float32)

    out = model(images)
    out = jax.block_until_ready(out)
    assert out.shape == (2, 8, 32), out.shape

    ref = reference_forward(model, images)
    max_err = float(jnp.max(jnp.abs(out - ref)))
    # Loose tolerance: bf16 MXU operands (f32 accumulation) in the bridge dot.
    assert max_err < 2e-2, f"mismatch vs reference: {max_err}"

    print("KERNEL_OK")
</pallas_src>

<mosaic_0001>
module attributes {stable_mosaic.version = 11 : i64} {
  func.func @kernel(%arg0: memref<1x16x128xf32, #tpu.memory_space<vmem>>, %arg1: memref<9x128xf32, #tpu.memory_space<vmem>>, %arg2: memref<9xf32, #tpu.memory_space<smem>>, %arg3: memref<1xf32, #tpu.memory_space<smem>>, %arg4: memref<1xf32, #tpu.memory_space<smem>>, %arg5: memref<1xf32, #tpu.memory_space<smem>>, %arg6: memref<128x32xbf16, #tpu.memory_space<vmem>>, %arg7: memref<1x32xf32, #tpu.memory_space<vmem>>, %arg8: memref<16x32xf32, #tpu.memory_space<vmem>>) attributes {dimension_semantics = [], scalar_prefetch = 0 : i64, scratch_operands = 0 : i64, tpu.core_type = #tpu.core_type<tc>} {
    %cst = arith.constant 0.000000e+00 : f32
    %0 = vector.broadcast %cst : f32 to vector<16x128xf32>
    %c0 = arith.constant 0 : index
    %c0_0 = arith.constant 0 : index
    %c0_1 = arith.constant 0 : index
    %1 = vector.load %arg0[%c0, %c0_0, %c0_1] : memref<1x16x128xf32, #tpu.memory_space<vmem>>, vector<1x16x128xf32>
    %2 = vector.shape_cast %1 : vector<1x16x128xf32> to vector<16x128xf32>
    %3 = vector.extract_strided_slice %2 {offsets = [0, 119], sizes = [16, 9], strides = [1, 1]} : vector<16x128xf32> to vector<16x9xf32>
    %4 = vector.extract_strided_slice %2 {offsets = [0, 0], sizes = [16, 119], strides = [1, 1]} : vector<16x128xf32> to vector<16x119xf32>
    %5 = tpu.concatenate %3, %4 in 1 : vector<16x9xf32>, vector<16x119xf32> -> vector<16x128xf32>
    %c0_2 = arith.constant 0 : index
    %c0_3 = arith.constant 0 : index
    %6 = vector.load %arg1[%c0_2, %c0_3] : memref<9x128xf32, #tpu.memory_space<vmem>>, vector<1x128xf32>
    %7 = vector.broadcast %6 : vector<1x128xf32> to vector<16x128xf32>
    %8 = arith.mulf %5, %7 : vector<16x128xf32>
    %c0_4 = arith.constant 0 : index
    %9 = memref.load %arg2[%c0_4] : memref<9xf32, #tpu.memory_space<smem>>
    %10 = vector.broadcast %9 : f32 to vector<16x128xf32>
    %11 = arith.mulf %10, %8 : vector<16x128xf32>
    %12 = arith.addf %0, %11 : vector<16x128xf32>
    %13 = vector.extract_strided_slice %2 {offsets = [0, 120], sizes = [16, 8], strides = [1, 1]} : vector<16x128xf32> to vector<16x8xf32>
    %14 = vector.extract_strided_slice %2 {offsets = [0, 0], sizes = [16, 120], strides = [1, 1]} : vector<16x128xf32> to vector<16x120xf32>
    %15 = tpu.concatenate %13, %14 in 1 : vector<16x8xf32>, vector<16x120xf32> -> vector<16x128xf32>
    %c1 = arith.constant 1 : index
    %c0_5 = arith.constant 0 : index
    %16 = vector.load %arg1[%c1, %c0_5] : memref<9x128xf32, #tpu.memory_space<vmem>>, vector<1x128xf32>
    %17 = vector.broadcast %16 : vector<1x128xf32> to vector<16x128xf32>
    %18 = arith.mulf %15, %17 : vector<16x128xf32>
    %c1_6 = arith.constant 1 : index
    %19 = memref.load %arg2[%c1_6] : memref<9xf32, #tpu.memory_space<smem>>
    %20 = vector.broadcast %19 : f32 to vector<16x128xf32>
    %21 = arith.mulf %20, %18 : vector<16x128xf32>
    %22 = arith.addf %12, %21 : vector<16x128xf32>
    %23 = vector.extract_strided_slice %2 {offsets = [0, 121], sizes = [16, 7], strides = [1, 1]} : vector<16x128xf32> to vector<16x7xf32>
    %24 = vector.extract_strided_slice %2 {offsets = [0, 0], sizes = [16, 121], strides = [1, 1]} : vector<16x128xf32> to vector<16x121xf32>
    %25 = tpu.concatenate %23, %24 in 1 : vector<16x7xf32>, vector<16x121xf32> -> vector<16x128xf32>
    %c2 = arith.constant 2 : index
    %c0_7 = arith.constant 0 : index
    %26 = vector.load %arg1[%c2, %c0_7] : memref<9x128xf32, #tpu.memory_space<vmem>>, vector<1x128xf32>
    %27 = vector.broadcast %26 : vector<1x128xf32> to vector<16x128xf32>
    %28 = arith.mulf %25, %27 : vector<16x128xf32>
    %c2_8 = arith.constant 2 : index
    %29 = memref.load %arg2[%c2_8] : memref<9xf32, #tpu.memory_space<smem>>
    %30 = vector.broadcast %29 : f32 to vector<16x128xf32>
    %31 = arith.mulf %30, %28 : vector<16x128xf32>
    %32 = arith.addf %22, %31 : vector<16x128xf32>
    %33 = vector.extract_strided_slice %2 {offsets = [0, 127], sizes = [16, 1], strides = [1, 1]} : vector<16x128xf32> to vector<16x1xf32>
    %34 = vector.extract_strided_slice %2 {offsets = [0, 0], sizes = [16, 127], strides = [1, 1]} : vector<16x128xf32> to vector<16x127xf32>
    %35 = tpu.concatenate %33, %34 in 1 : vector<16x1xf32>, vector<16x127xf32> -> vector<16x128xf32>
    %c3 = arith.constant 3 : index
    %c0_9 = arith.constant 0 : index
    %36 = vector.load %arg1[%c3, %c0_9] : memref<9x128xf32, #tpu.memory_space<vmem>>, vector<1x128xf32>
    %37 = vector.broadcast %36 : vector<1x128xf32> to vector<16x128xf32>
    %38 = arith.mulf %35, %37 : vector<16x128xf32>
    %c3_10 = arith.constant 3 : index
    %39 = memref.load %arg2[%c3_10] : memref<9xf32, #tpu.memory_space<smem>>
    %40 = vector.broadcast %39 : f32 to vector<16x128xf32>
    %41 = arith.mulf %40, %38 : vector<16x128xf32>
    %42 = arith.addf %32, %41 : vector<16x128xf32>
    %c4 = arith.constant 4 : index
    %43 = memref.load %arg2[%c4] : memref<9xf32, #tpu.memory_space<smem>>
    %44 = vector.broadcast %43 : f32 to vector<16x128xf32>
    %45 = arith.mulf %44, %2 : vector<16x128xf32>
    %46 = arith.addf %42, %45 : vector<16x128xf32>
    %47 = vector.extract_strided_slice %2 {offsets = [0, 1], sizes = [16, 127], strides = [1, 1]} : vector<16x128xf32> to vector<16x127xf32>
    %48 = vector.extract_strided_slice %2 {offsets = [0, 0], sizes = [16, 1], strides = [1, 1]} : vector<16x128xf32> to vector<16x1xf32>
    %49 = tpu.concatenate %47, %48 in 1 : vector<16x127xf32>, vector<16x1xf32> -> vector<16x128xf32>
    %c5 = arith.constant 5 : index
    %c0_11 = arith.constant 0 : index
    %50 = vector.load %arg1[%c5, %c0_11] : memref<9x128xf32, #tpu.memory_space<vmem>>, vector<1x128xf32>
    %51 = vector.broadcast %50 : vector<1x128xf32> to vector<16x128xf32>
    %52 = arith.mulf %49, %51 : vector<16x128xf32>
    %c5_12 = arith.constant 5 : index
    %53 = memref.load %arg2[%c5_12] : memref<9xf32, #tpu.memory_space<smem>>
    %54 = vector.broadcast %53 : f32 to vector<16x128xf32>
    %55 = arith.mulf %54, %52 : vector<16x128xf32>
    %56 = arith.addf %46, %55 : vector<16x128xf32>
    %57 = vector.extract_strided_slice %2 {offsets = [0, 7], sizes = [16, 121], strides = [1, 1]} : vector<16x128xf32> to vector<16x121xf32>
    %58 = vector.extract_strided_slice %2 {offsets = [0, 0], sizes = [16, 7], strides = [1, 1]} : vector<16x128xf32> to vector<16x7xf32>
    %59 = tpu.concatenate %57, %58 in 1 : vector<16x121xf32>, vector<16x7xf32> -> vector<16x128xf32>
    %c6 = arith.constant 6 : index
    %c0_13 = arith.constant 0 : index
    %60 = vector.load %arg1[%c6, %c0_13] : memref<9x128xf32, #tpu.memory_space<vmem>>, vector<1x128xf32>
    %61 = vector.broadcast %60 : vector<1x128xf32> to vector<16x128xf32>
    %62 = arith.mulf %59, %61 : vector<16x128xf32>
    %c6_14 = arith.constant 6 : index
    %63 = memref.load %arg2[%c6_14] : memref<9xf32, #tpu.memory_space<smem>>
    %64 = vector.broadcast %63 : f32 to vector<16x128xf32>
    %65 = arith.mulf %64, %62 : vector<16x128xf32>
    %66 = arith.addf %56, %65 : vector<16x128xf32>
    %67 = vector.extract_strided_slice %2 {offsets = [0, 8], sizes = [16, 120], strides = [1, 1]} : vector<16x128xf32> to vector<16x120xf32>
    %68 = vector.extract_strided_slice %2 {offsets = [0, 0], sizes = [16, 8], strides = [1, 1]} : vector<16x128xf32> to vector<16x8xf32>
    %69 = tpu.concatenate %67, %68 in 1 : vector<16x120xf32>, vector<16x8xf32> -> vector<16x128xf32>
    %c7 = arith.constant 7 : index
    %c0_15 = arith.constant 0 : index
    %70 = vector.load %arg1[%c7, %c0_15] : memref<9x128xf32, #tpu.memory_space<vmem>>, vector<1x128xf32>
    %71 = vector.broadcast %70 : vector<1x128xf32> to vector<16x128xf32>
    %72 = arith.mulf %69, %71 : vector<16x128xf32>
    %c7_16 = arith.constant 7 : index
    %73 = memref.load %arg2[%c7_16] : memref<9xf32, #tpu.memory_space<smem>>
    %74 = vector.broadcast %73 : f32 to vector<16x128xf32>
    %75 = arith.mulf %74, %72 : vector<16x128xf32>
    %76 = arith.addf %66, %75 : vector<16x128xf32>
    %77 = vector.extract_strided_slice %2 {offsets = [0, 9], sizes = [16, 119], strides = [1, 1]} : vector<16x128xf32> to vector<16x119xf32>
    %78 = vector.extract_strided_slice %2 {offsets = [0, 0], sizes = [16, 9], strides = [1, 1]} : vector<16x128xf32> to vector<16x9xf32>
    %79 = tpu.concatenate %77, %78 in 1 : vector<16x119xf32>, vector<16x9xf32> -> vector<16x128xf32>
    %c8 = arith.constant 8 : index
    %c0_17 = arith.constant 0 : index
    %80 = vector.load %arg1[%c8, %c0_17] : memref<9x128xf32, #tpu.memory_space<vmem>>, vector<1x128xf32>
    %81 = vector.broadcast %80 : vector<1x128xf32> to vector<16x128xf32>
    %82 = arith.mulf %79, %81 : vector<16x128xf32>
    %c8_18 = arith.constant 8 : index
    %83 = memref.load %arg2[%c8_18] : memref<9xf32, #tpu.memory_space<smem>>
    %84 = vector.broadcast %83 : f32 to vector<16x128xf32>
    %85 = arith.mulf %84, %82 : vector<16x128xf32>
    %86 = arith.addf %76, %85 : vector<16x128xf32>
    %cst_19 = arith.constant 0.000000e+00 : f32
    %87 = vector.broadcast %cst_19 : f32 to vector<16x32xf32>
    %88 = vector.shape_cast %86 : vector<16x128xf32> to vector<1x16x128xf32>
    %cst_20 = arith.constant dense<0.000000e+00> : vector<1xf32>
    %89 = vector.multi_reduction <add>, %88, %cst_20 [1, 2] : vector<1x16x128xf32> to vector<1xf32>
    %90 = vector.shape_cast %89 : vector<1xf32> to vector<1x1x1xf32>
    %91 = vector.extract %90[0, 0, 0] : f32 from vector<1x1x1xf32>
    %92 = arith.mulf %86, %86 : vector<16x128xf32>
    %93 = vector.shape_cast %92 : vector<16x128xf32> to vector<1x16x128xf32>
    %cst_21 = arith.constant dense<0.000000e+00> : vector<1xf32>
    %94 = vector.multi_reduction <add>, %93, %cst_21 [1, 2] : vector<1x16x128xf32> to vector<1xf32>
    %95 = vector.shape_cast %94 : vector<1xf32> to vector<1x1x1xf32>
    %96 = vector.extract %95[0, 0, 0] : f32 from vector<1x1x1xf32>
    %cst_22 = arith.constant 4.8828125E-4 : f32
    %97 = arith.mulf %91, %cst_22 : f32
    %cst_23 = arith.constant 4.8828125E-4 : f32
    %98 = arith.mulf %96, %cst_23 : f32
    %99 = arith.mulf %97, %97 : f32
    %100 = arith.subf %98, %99 : f32
    %cst_24 = arith.constant 0.000000e+00 : f32
    %101 = arith.maximumf %100, %cst_24 : f32
    %c0_25 = arith.constant 0 : index
    %102 = memref.load %arg4[%c0_25] : memref<1xf32, #tpu.memory_space<smem>>
    %cst_26 = arith.constant 9.99999974E-6 : f32
    %103 = arith.addf %101, %cst_26 : f32
    %104 = math.rsqrt %103 : f32
    %105 = arith.mulf %102, %104 : f32
    %106 = vector.broadcast %97 : f32 to vector<16x128xf32>
    %107 = arith.subf %86, %106 : vector<16x128xf32>
    %108 = vector.broadcast %105 : f32 to vector<16x128xf32>
    %109 = arith.mulf %107, %108 : vector<16x128xf32>
    %c0_27 = arith.constant 0 : index
    %110 = memref.load %arg5[%c0_27] : memref<1xf32, #tpu.memory_space<smem>>
    %111 = vector.broadcast %110 : f32 to vector<16x128xf32>
    %112 = arith.addf %109, %111 : vector<16x128xf32>
    %cst_28 = arith.constant 0.000000e+00 : f32
    %113 = vector.broadcast %cst_28 : f32 to vector<16x128xf32>
    %114 = arith.maximumf %112, %113 : vector<16x128xf32>
    %115 = arith.truncf %114 : vector<16x128xf32> to vector<16x128xbf16>
    %c0_29 = arith.constant 0 : index
    %c0_30 = arith.constant 0 : index
    %116 = vector.load %arg6[%c0_29, %c0_30] : memref<128x32xbf16, #tpu.memory_space<vmem>>, vector<128x32xbf16>
    %cst_31 = arith.constant dense<0.000000e+00> : vector<16x32xf32>
    %117 = tpu.matmul %115, %116, %cst_31 {dimension_numbers = #tpu.dot_dimension_numbers<[1], [0], [0], [1], [0, 0, 1, 1], [], []>} : vector<16x128xbf16>, vector<128x32xbf16>, vector<16x32xf32> -> vector<16x32xf32>
    %118 = arith.addf %87, %117 : vector<16x32xf32>
    %c0_32 = arith.constant 0 : index
    %c0_33 = arith.constant 0 : index
    %119 = vector.load %arg7[%c0_32, %c0_33] : memref<1x32xf32, #tpu.memory_space<vmem>>, vector<1x32xf32>
    %120 = vector.broadcast %119 : vector<1x32xf32> to vector<16x32xf32>
    %121 = arith.addf %118, %120 : vector<16x32xf32>
    %cst_34 = arith.constant 0.000000e+00 : f32
    %122 = vector.broadcast %cst_34 : f32 to vector<16x32xf32>
    %123 = arith.maximumf %121, %122 : vector<16x32xf32>
    %c0_35 = arith.constant 0 : index
    %c0_36 = arith.constant 0 : index
    %124 = vector.load %arg8[%c0_35, %c0_36] : memref<16x32xf32, #tpu.memory_space<vmem>>, vector<16x32xf32>
    tpu.vector_store %arg8[%c0_35, %c0_36], %123 {strides = array<i32>} : memref<16x32xf32, #tpu.memory_space<vmem>>, vector<16x32xf32>,
    return
  }
}

</mosaic_0001>

<llo_original>
// kernel: tpu_custom_call.1
$region0: #{tpu_custom_call.1}
  #allocation0 [shape = 'u32[]', space=smem, size = 0x4, offset = 0x4, fixed_abs, tag = 'smem constant byte address 0x4 - core index']
  #allocation1 [shape = 'u32[144,128]{1,0:T(1,128)}', space=vmem, size = 0x12000, scoped, tag = 'internal scratch']
  #allocation2 [shape = 'f32[1]{0:T(128)S(6)}', space=smem, size = 0x200, scoped, tag = 'scoped memory for tpu_custom_call.1']
  #allocation3 [shape = 'f32[1]{0:T(128)S(6)}', space=smem, size = 0x200, scoped, tag = 'scoped memory for tpu_custom_call.1']
  #allocation4 [shape = 'f32[1]{0:T(128)S(6)}', space=smem, size = 0x200, scoped, tag = 'scoped memory for tpu_custom_call.1']
  %s0 = inlined_call_operand.vmem [shape: f32[1,16,128], index: 0, kind: input, shape index: {}]
  %s1 = inlined_call_operand.vmem [shape: f32[9,128], index: 1, kind: input, shape index: {}]
  %s2 = inlined_call_operand.vmem [shape: f32[9], index: 2, kind: input, shape index: {}]
  %s3 = inlined_call_operand.<no memory space> [shape: f32[1], index: 3, kind: input, shape index: {}]
  %s4 = inlined_call_operand.<no memory space> [shape: f32[1], index: 4, kind: input, shape index: {}]
  %s5 = inlined_call_operand.<no memory space> [shape: f32[1], index: 5, kind: input, shape index: {}]
  %s6 = inlined_call_operand.vmem [shape: bf16[128,32], index: 6, kind: input, shape index: {}]
  %s7 = inlined_call_operand.vmem [shape: f32[1,32], index: 7, kind: input, shape index: {}]
  %s8 = inlined_call_operand.hbm [shape: f32[16,32], index: 8, kind: output, shape index: {}]
  %s9 = sld [smem:[#allocation0]]
  $region46: #{tpu_custom_call.1} parent=0
    _
  %s11 = ssub.s32 1, %s9
  %s12 = scalar_select 0, %s11, %s9
  %13 = sst [smem:[#allocation2]] %s3
  %14 = sst [smem:[#allocation3]] %s4
  %15 = sst [smem:[#allocation4]] %s5
  $region1: #{tpu_custom_call.1} parent=0
    #allocation5 [shape = 'u8[512]{0}', space=smem, size = 0x200, scoped, tag = 'input window, operand 2, single buffered']
    #allocation6 [shape = 's32[1]{0}', space=sflag, size = 0x4, scoped, tag = 'scoped memory for tpu_custom_call.1']
    #allocation7 [shape = 's32[1]{0}', space=sflag, size = 0x4, scoped, tag = 'scoped memory for tpu_custom_call.1']
    #allocation8 [shape = 'u8[8192]{0}', space=vmem, size = 0x2000, scoped, tag = 'output window, operand 0, single buffered']
    %16 = vsyncpa [#allocation7], 0
    %17 = vsyncpa [#allocation6], 0
    // Predicated region
    $region2: #{tpu_custom_call.1} parent=1 // pred_check
      _
    $region3: #{tpu_custom_call.1} parent=1 // pred_check_branch
      %19 = sbr.rel (0) target = $region5
    $region4: #{tpu_custom_call.1} parent=1 // pred_region
      _
    $region5: #{tpu_custom_call.1} parent=1 // pred_fallthru
      _
    // Predicated region
    $region6: #{tpu_custom_call.1} parent=1 // pred_check
      _
    $region7: #{tpu_custom_call.1} parent=1 // pred_check_branch
      %21 = sbr.rel (0) target = $region9
    $region8: #{tpu_custom_call.1} parent=1 // pred_region
      _
    $region9: #{tpu_custom_call.1} parent=1 // pred_fallthru
      _
    // Predicated region
    $region10: #{tpu_custom_call.1} parent=1 // pred_check
      _
    $region11: #{tpu_custom_call.1} parent=1 // pred_check_branch
      %23 = sbr.rel (0) target = $region13
    $region12: #{tpu_custom_call.1} parent=1 // pred_region
      %s25 = ssub.s32 16, 16
      %26 = vsyncadd [#allocation7], %s25
      %s28 = sshll.u32 %s2, 4
      %s29 = int_to_ptr.vmem [resolvable:$true] %s28
      %31 = dma.vmem_to_smem %s29, 16, [#allocation5], [#allocation7]
    $region13: #{tpu_custom_call.1} parent=1 // pred_fallthru
      _
    // Predicated region
    $region14: #{tpu_custom_call.1} parent=1 // pred_check
      _
    $region15: #{tpu_custom_call.1} parent=1 // pred_check_branch
      %33 = sbr.rel (0) target = $region17
    $region16: #{tpu_custom_call.1} parent=1 // pred_region
      _
    $region17: #{tpu_custom_call.1} parent=1 // pred_fallthru
      _
    // Predicated region
    $region18: #{tpu_custom_call.1} parent=1 // pred_check
      _
    $region19: #{tpu_custom_call.1} parent=1 // pred_check_branch
      %35 = sbr.rel (0) target = $region21
    $region20: #{tpu_custom_call.1} parent=1 // pred_region
      _
    $region21: #{tpu_custom_call.1} parent=1 // pred_fallthru
      _
    // Predicated region
    $region22: #{tpu_custom_call.1} parent=1 // pred_check
      _
    $region23: #{tpu_custom_call.1} parent=1 // pred_check_branch
      %37 = sbr.rel (0) target = $region25
    $region24: #{tpu_custom_call.1} parent=1 // pred_region
      _
    $region25: #{tpu_custom_call.1} parent=1 // pred_fallthru
      _
    // Predicated region
    $region26: #{tpu_custom_call.1} parent=1 // pred_check
      _
    $region27: #{tpu_custom_call.1} parent=1 // pred_check_branch
      %39 = sbr.rel (0) target = $region29
    $region28: #{tpu_custom_call.1} parent=1 // pred_region
      _
    $region29: #{tpu_custom_call.1} parent=1 // pred_fallthru
      _
    // Predicated region
    $region30: #{tpu_custom_call.1} parent=1 // pred_check
      _
    $region31: #{tpu_custom_call.1} parent=1 // pred_check_branch
      %41 = sbr.rel (0) target = $region33
    $region32: #{tpu_custom_call.1} parent=1 // pred_region
      _
    $region33: #{tpu_custom_call.1} parent=1 // pred_fallthru
      _
    // Predicated region
    $region34: #{tpu_custom_call.1} parent=1 // pred_check
      _
    $region35: #{tpu_custom_call.1} parent=1 // pred_check_branch
      %43 = sbr.rel (0) target = $region37
    $region36: #{tpu_custom_call.1} parent=1 // pred_region
      %44 = dma.done [#allocation7], 16
    $region37: #{tpu_custom_call.1} parent=1 // pred_fallthru
      _
    %45 = sfence
    %v47 = vld [vmem:[%s0] sm:$0xff]
    %v48 = vld [vmem:[%s0 + $0x8] sm:$0xff]
    %51 = vrot.lane.b32.xlu0 %v47, 9
    %v52 = vpop.permute.xlu0 %51
    %53 = vrot.lane.b32.xlu0 %v48, 9
    %v54 = vpop.permute.xlu0 %53
    %v57 = vld [vmem:[%s1] sm:$0x1]
    %v58 = vlaneseq
    %v59 = vshrl.u32 %v58, 7
    %v60 = vsub.s32 0, %v59
    %v61 = vrot.slane %v57, %v60
    %v62 = vmul.f32 %v52, %v61
    %v63 = vmul.f32 %v54, %v61
    %s64 = sld [smem:[#allocation5]]
    %v65 = vstv %s64
    %v66 = vmul.f32 %v65, %v62
    %v67 = vmul.f32 %v65, %v63
    %v68 = vadd.f32 %v66, 0.0
    %v69 = vadd.f32 %v67, 0.0
    %70 = vrot.lane.b32.xlu0 %v47, 8
    %v71 = vpop.permute.xlu0 %70
    %72 = vrot.lane.b32.xlu0 %v48, 8
    %v73 = vpop.permute.xlu0 %72
    %v76 = vld [vmem:[%s1 + $0x1] sm:$0x1]
    %v77 = vlaneseq
    %v78 = vshrl.u32 %v77, 7
    %v79 = vsub.s32 0, %v78
    %v80 = vrot.slane %v76, %v79
    %v81 = vmul.f32 %v71, %v80
    %v82 = vmul.f32 %v73, %v80
    %s83 = sld [smem:[#allocation5 + $0x1]]
    %v84 = vstv %s83
    %v85 = vmul.f32 %v84, %v81
    %v86 = vmul.f32 %v84, %v82
    %v87 = vadd.f32 %v68, %v85
    %v88 = vadd.f32 %v69, %v86
    %89 = vrot.lane.b32.xlu0 %v47, 7
    %v90 = vpop.permute.xlu0 %89
    %91 = vrot.lane.b32.xlu0 %v48, 7
    %v92 = vpop.permute.xlu0 %91
    %v95 = vld [vmem:[%s1 + $0x2] sm:$0x1]
    %v96 = vlaneseq
    %v97 = vshrl.u32 %v96, 7
    %v98 = vsub.s32 0, %v97
    %v99 = vrot.slane %v95, %v98
    %v100 = vmul.f32 %v90, %v99
    %v101 = vmul.f32 %v92, %v99
    %s102 = sld [smem:[#allocation5 + $0x2]]
    %v103 = vstv %s102
    %v104 = vmul.f32 %v103, %v100
    %v105 = vmul.f32 %v103, %v101
    %v106 = vadd.f32 %v87, %v104
    %v107 = vadd.f32 %v88, %v105
    %108 = vrot.lane.b32.xlu0 %v47, 1
    %v109 = vpop.permute.xlu0 %108
    %110 = vrot.lane.b32.xlu0 %v48, 1
    %v111 = vpop.permute.xlu0 %110
    %v114 = vld [vmem:[%s1 + $0x3] sm:$0x1]
    %v115 = vlaneseq
    %v116 = vshrl.u32 %v115, 7
    %v117 = vsub.s32 0, %v116
    %v118 = vrot.slane %v114, %v117
    %v119 = vmul.f32 %v109, %v118
    %v120 = vmul.f32 %v111, %v118
    %s121 = sld [smem:[#allocation5 + $0x3]]
    %v122 = vstv %s121
    %v123 = vmul.f32 %v122, %v119
    %v124 = vmul.f32 %v122, %v120
    %v125 = vadd.f32 %v106, %v123
    %v126 = vadd.f32 %v107, %v124
    %s127 = sld [smem:[#allocation5 + $0x4]]
    %v128 = vstv %s127
    %v129 = vmul.f32 %v128, %v47
    %v130 = vmul.f32 %v128, %v48
    %v131 = vadd.f32 %v125, %v129
    %v132 = vadd.f32 %v126, %v130
    %133 = vrot.lane.b32.xlu0 %v47, 127
    %v134 = vpop.permute.xlu0 %133
    %135 = vrot.lane.b32.xlu0 %v48, 127
    %v136 = vpop.permute.xlu0 %135
    %v139 = vld [vmem:[%s1 + $0x5] sm:$0x1]
    %v140 = vlaneseq
    %v141 = vshrl.u32 %v140, 7
    %v142 = vsub.s32 0, %v141
    %v143 = vrot.slane %v139, %v142
    %v144 = vmul.f32 %v134, %v143
    %v145 = vmul.f32 %v136, %v143
    %s146 = sld [smem:[#allocation5 + $0x5]]
    %v147 = vstv %s146
    %v148 = vmul.f32 %v147, %v144
    %v149 = vmul.f32 %v147, %v145
    %v150 = vadd.f32 %v131, %v148
    %v151 = vadd.f32 %v132, %v149
    %152 = vrot.lane.b32.xlu0 %v47, 121
    %v153 = vpop.permute.xlu0 %152
    %154 = vrot.lane.b32.xlu0 %v48, 121
    %v155 = vpop.permute.xlu0 %154
    %v158 = vld [vmem:[%s1 + $0x6] sm:$0x1]
    %v159 = vlaneseq
    %v160 = vshrl.u32 %v159, 7
    %v161 = vsub.s32 0, %v160
    %v162 = vrot.slane %v158, %v161
    %v163 = vmul.f32 %v153, %v162
    %v164 = vmul.f32 %v155, %v162
    %s165 = sld [smem:[#allocation5 + $0x6]]
    %v166 = vstv %s165
    %v167 = vmul.f32 %v166, %v163
    %v168 = vmul.f32 %v166, %v164
    %v169 = vadd.f32 %v150, %v167
    %v170 = vadd.f32 %v151, %v168
    %171 = vrot.lane.b32.xlu0 %v47, 120
    %v172 = vpop.permute.xlu0 %171
    %173 = vrot.lane.b32.xlu0 %v48, 120
    %v174 = vpop.permute.xlu0 %173
    %v177 = vld [vmem:[%s1 + $0x7] sm:$0x1]
    %v178 = vlaneseq
    %v179 = vshrl.u32 %v178, 7
    %v180 = vsub.s32 0, %v179
    %v181 = vrot.slane %v177, %v180
    %v182 = vmul.f32 %v172, %v181
    %v183 = vmul.f32 %v174, %v181
    %s184 = sld [smem:[#allocation5 + $0x7]]
    %v185 = vstv %s184
    %v186 = vmul.f32 %v185, %v182
    %v187 = vmul.f32 %v185, %v183
    %v188 = vadd.f32 %v169, %v186
    %v189 = vadd.f32 %v170, %v187
    %190 = vrot.lane.b32.xlu0 %v47, 119
    %v191 = vpop.permute.xlu0 %190
    %192 = vrot.lane.b32.xlu0 %v48, 119
    %v193 = vpop.permute.xlu0 %192
    %v196 = vld [vmem:[%s1 + $0x8] sm:$0x1]
    %v197 = vlaneseq
    %v198 = vshrl.u32 %v197, 7
    %v199 = vsub.s32 0, %v198
    %v200 = vrot.slane %v196, %v199
    %v201 = vmul.f32 %v191, %v200
    %v202 = vmul.f32 %v193, %v200
    %s203 = sld [smem:[#allocation5 + $0x8]]
    %v204 = vstv %s203
    %v205 = vmul.f32 %v204, %v201
    %v206 = vmul.f32 %v204, %v202
    %v207 = vadd.f32 %v188, %v205
    %v208 = vadd.f32 %v189, %v206
    %v209 = vadd.f32 %v207, %v208
    %210 = vadd.xlane.f32.xlu0 %v209
    %v211 = vpop.xlane.xlu0 %210
    %v212 = vrot.slane %v211, 4
    %v213 = vadd.f32 %v211, %v212
    %v214 = vrot.slane %v213, 2
    %v215 = vadd.f32 %v213, %v214
    %v216 = vrot.slane %v215, 1
    %v217 = vadd.f32 %v215, %v216
    %s218 = vtos %v217
    %v219 = vmul.f32 %v207, %v207
    %v220 = vmul.f32 %v208, %v208
    %v221 = vadd.f32 %v219, %v220
    %222 = vadd.xlane.f32.xlu0 %v221
    %v223 = vpop.xlane.xlu0 %222
    %v224 = vrot.slane %v223, 4
    %v225 = vadd.f32 %v223, %v224
    %v226 = vrot.slane %v225, 2
    %v227 = vadd.f32 %v225, %v226
    %v228 = vrot.slane %v227, 1
    %v229 = vadd.f32 %v227, %v228
    %s230 = vtos %v229
    %s231 = smul.f32 %s218, 0.00048828125
    %s232 = smul.f32 %s230, 0.00048828125
    %s233 = smul.f32 %s231, %s231
    %s234 = ssub.f32 %s232, %s233
    %s235 = smax.f32 %s234, 0.0
    %s236 = sld [smem:[#allocation3]]
    %s237 = sadd.f32 %s235, 1e-05
    %v238 = vstv %s237
    %v239 = vrsqrt.pop %v238
    %s240 = vtos %v239
    %s241 = smul.f32 %s236, %s240
    %v242 = vstv %s231
    %v243 = vsub.f32 %v207, %v242
    %v244 = vsub.f32 %v208, %v242
    %v245 = vstv %s241
    %v246 = vmul.f32 %v243, %v245
    %v247 = vmul.f32 %v244, %v245
    %s248 = sld [smem:[#allocation4]]
    %v249 = vstv %s248
    %v250 = vadd.f32 %v246, %v249
    %v251 = vadd.f32 %v247, %v249
    %v252 = vmax.f32 %v250, 0.0
    %v253 = vmax.f32 %v251, 0.0
    %v254 = vpack.c.bf16 %v253, %v252
    %v255 = vld [vmem:[%s6] sm:$0xf]
    %v256 = vld [vmem:[%s6 + $0x4] sm:$0xf]
    %v257 = vld [vmem:[%s6 + $0x8] sm:$0xf]
    %v258 = vld [vmem:[%s6 + $0xc] sm:$0xf]
    %v259 = vld [vmem:[%s6 + $0x10] sm:$0xf]
    %v260 = vld [vmem:[%s6 + $0x14] sm:$0xf]
    %v261 = vld [vmem:[%s6 + $0x18] sm:$0xf]
    %v262 = vld [vmem:[%s6 + $0x1c] sm:$0xf]
    %v263 = vld [vmem:[%s6 + $0x20] sm:$0xf]
    %v264 = vld [vmem:[%s6 + $0x24] sm:$0xf]
    %v265 = vld [vmem:[%s6 + $0x28] sm:$0xf]
    %v266 = vld [vmem:[%s6 + $0x2c] sm:$0xf]
    %v267 = vld [vmem:[%s6 + $0x30] sm:$0xf]
    %v268 = vld [vmem:[%s6 + $0x34] sm:$0xf]
    %v269 = vld [vmem:[%s6 + $0x38] sm:$0xf]
    %v270 = vld [vmem:[%s6 + $0x3c] sm:$0xf]
    %v271 = vld [vmem:[%s7] sm:$0x1]
    %v273 = vlaneseq
    %v274 = vshrl.u32 %v273, 7
    %v275 = vsub.s32 0, %v274
    %v276 = vrot.slane %v271, %v275
    %v294 = vunpack.c.l.b16 %v255
    %v295 = vunpack.c.l.b16 %v256
    %v296 = vunpack.c.l.b16 %v257
    %v297 = vunpack.c.l.b16 %v258
    %v298 = vunpack.c.l.b16 %v259
    %v299 = vunpack.c.l.b16 %v260
    %v300 = vunpack.c.l.b16 %v261
    %v301 = vunpack.c.l.b16 %v262
    %v302 = vunpack.c.l.b16 %v263
    %v303 = vunpack.c.l.b16 %v264
    %v304 = vunpack.c.l.b16 %v265
    %v305 = vunpack.c.l.b16 %v266
    %v306 = vunpack.c.l.b16 %v267
    %v307 = vunpack.c.l.b16 %v268
    %v308 = vunpack.c.l.b16 %v269
    %v309 = vunpack.c.l.b16 %v270
    %v310 = vpack.c.b16 %v295, %v294
    %v311 = vpack.c.b16 %v297, %v296
    %v312 = vpack.c.b16 %v299, %v298
    %v313 = vpack.c.b16 %v301, %v300
    %v314 = vpack.c.b16 %v303, %v302
    %v315 = vpack.c.b16 %v305, %v304
    %v316 = vpack.c.b16 %v307, %v306
    %v317 = vpack.c.b16 %v309, %v308
    %326 = vmatprep.subr.bf16.mxu0 0
    %327 = vmatpush1.bf16.msra.mxu0 %v310
    %328 = vmatprep.subr.bf16.mxu0 0
    %329 = vmatpush1.bf16.msra.mxu0 %v311
    %330 = vmatprep.subr.bf16.mxu0 0
    %331 = vmatpush1.bf16.msra.mxu0 %v312
    %332 = vmatprep.subr.bf16.mxu0 0
    %333 = vmatpush1.bf16.msra.mxu0 %v313
    %334 = vmatprep.subr.bf16.mxu0 0
    %335 = vmatpush1.bf16.msra.mxu0 %v314
    %336 = vmatprep.subr.bf16.mxu0 0
    %337 = vmatpush1.bf16.msra.mxu0 %v315
    %338 = vmatprep.subr.bf16.mxu0 0
    %339 = vmatpush1.bf16.msra.mxu0 %v316
    %340 = vmatprep.subr.bf16.mxu0 0
    %341 = vmatpush1.bf16.msra.mxu0 %v317
    %342 = vmatprep.subr.bf16.mxu0 0
    %343 = vmatpush1.bf16.msra.mxu0 0
    %344 = vmatprep.subr.bf16.mxu0 0
    %345 = vmatpush1.bf16.msra.mxu0 0
    %346 = vmatprep.subr.bf16.mxu0 0
    %347 = vmatpush1.bf16.msra.mxu0 0
    %348 = vmatprep.subr.bf16.mxu0 0
    %349 = vmatpush1.bf16.msra.mxu0 0
    %350 = vmatprep.subr.bf16.mxu0 0
    %351 = vmatpush1.bf16.msra.mxu0 0
    %352 = vmatprep.subr.bf16.mxu0 0
    %353 = vmatpush1.bf16.msra.mxu0 0
    %354 = vmatprep.subr.bf16.mxu0 0
    %355 = vmatpush1.bf16.msra.mxu0 0
    %356 = vmatprep.subr.bf16.mxu0 0
    %357 = vmatpush1.bf16.msra.mxu0 0
    %358 = vmatprep.mubr.bf16.mxu0 0
    %359 = vmatmul.mubr.bf16.gmra.mrb[0].mxu0 %v254
    %v360 = vpop.f32.mrb[0].mxu0
    %v361 = vadd.f32 %v276, %v360
    %v362 = vpop.f32.mrb[0].mxu0
    %v363 = vpop.f32.mrb[0].mxu0
    %v364 = vadd.f32 %v276, %v363
    %v365 = vpop.f32.mrb[0].mxu0
    %366 = vdwg.mxu0
    %v367 = vmax.f32 %v361, 0.0
    %v368 = vmax.f32 %v364, 0.0
    %vm369 = vcmask 261120
    %370 = vst.msk [vmem:[#allocation8] sm:$0xff] %vm369, %v367
    %371 = vst.msk [vmem:[#allocation8 + $0x8] sm:$0xff] %vm369, %v368
    // Predicated region
    $region38: #{tpu_custom_call.1} parent=1 // pred_check
      _
    $region39: #{tpu_custom_call.1} parent=1 // pred_check_branch
      %373 = sbr.rel (0) target = $region41
    $region40: #{tpu_custom_call.1} parent=1 // pred_region
      %s375 = ssub.s32 256, 256
      %376 = vsyncadd [#allocation6], %s375
      %s377 = sshll.u32 [#allocation8], 4
      %s378 = int_to_ptr.vmem [resolvable:$true] %s377
      %383 = dma.vmem_to_hbm [thread:$0]  %s378, 256, %s8, [#allocation6], 128, 128, 8
    $region41: #{tpu_custom_call.1} parent=1 // pred_fallthru
      _
    // Predicated region
    $region42: #{tpu_custom_call.1} parent=1 // pred_check
      _
    $region43: #{tpu_custom_call.1} parent=1 // pred_check_branch
      %385 = sbr.rel (0) target = $region45
    $region44: #{tpu_custom_call.1} parent=1 // pred_region
      %386 = dma.done [#allocation6], 256
    $region45: #{tpu_custom_call.1} parent=1 // pred_fallthru
      _
    %387 = vsyncpa [#allocation6], 1
    %388 = vsyncpa [#allocation7], 1

</llo_original>
